<compile_context>
chip_gen: v5e
topology: v5e:2x2
jax: 0.10.0
libtpu: 0.0.40
codegen_flags: <defaults>
</compile_context>

<pallas_src>
import functools

import jax
import jax.numpy as jnp
from jax.experimental import pallas as pl
from jax.experimental.pallas import tpu as pltpu


# -----------------------------------------------------------------------------
# Fused kernel factory
# -----------------------------------------------------------------------------
def _make_fused_kernel(*, n_gnn_layers, gnn_size, phases, num_cpu, block_steps,
                       features, mlp_n_layers, mlp_activation):
    G = gnn_size
    B2 = block_steps * num_cpu          # rows per block in (step, cpu) space
    PB = phases * B2                    # rows per block in node space
    f32 = jnp.float32
    act = jnp.tanh if mlp_activation == "tanh" else (lambda v: jnp.maximum(v, 0.0))

    def kernel(a_ref, h_ref, *refs):
        o_ref = refs[-1]
        params = refs[:-1]

        a_blk = a_ref[...]                                   # (PB, PB) block adjacency
        # (phases, B2, F) -> (PB, F): leading-dim collapse only (B2 % 8 == 0).
        h = h_ref[...].reshape(PB, features)

        # ---- GNN layers: ONE fused weight matmul per layer -------------------
        #   z      = h @ [W_self || W_neigh]                       (PB, 2G)
        #   zn_agg = A_blk @ z[:, G:]        (per-step aggregation, neigh half)
        #   h_next = relu([z[:, :G] || zn_agg] + [b_self || b_neigh])
        idx = 0
        for _ in range(n_gnn_layers):
            w, b = params[idx], params[idx + 1]; idx += 2
            z = jnp.dot(h, w[...], preferred_element_type=f32)
            zn_agg = jnp.dot(a_blk, z[:, G:], preferred_element_type=f32)
            h = jnp.maximum(
                jnp.concatenate([z[:, :G], zn_agg], axis=-1) + b[...], 0.0)

        # ---- MLP layer 0: the per-(step,cpu) input is the concat over phases
        #      of the node's 2G features.  W1 is pre-reshaped to (phases, 2G, H)
        #      so we accumulate `phases` wide dots on the contiguous per-phase
        #      (B2, 2G) slabs instead of materialising the concatenation. ------
        w1, b1 = params[idx], params[idx + 1]; idx += 2       # (P, 2G, H), (1, H)
        y = jnp.dot(h[0:B2, :], w1[0], preferred_element_type=f32)
        for p in range(1, phases):
            y = y + jnp.dot(h[p * B2:(p + 1) * B2, :], w1[p],
                            preferred_element_type=f32)
        y = act(y + b1[...])                                  # (B2, H)

        # ---- remaining MLP hidden layers --------------------------------------
        for _ in range(1, mlp_n_layers):
            w, b = params[idx], params[idx + 1]; idx += 2
            y = act(jnp.dot(y, w[...], preferred_element_type=f32) + b[...])

        # ---- value head: (1,H) x (B2,H)^T -> (1, B2) lane-dense row.  One
        #      tiny M=1 MXU dot keeps the output store unmasked instead of the
        #      (B2, 1) masked column store used previously. --------------------
        w_out, b_out = params[idx], params[idx + 1]           # (1, H), (1, 1)
        v = jnp.einsum('oh,bh->ob', w_out[...], y,
                       preferred_element_type=f32) + b_out[...]
        o_ref[...] = v.reshape(1, 1, B2)

    return kernel


# -----------------------------------------------------------------------------
# Wrapper helpers
# -----------------------------------------------------------------------------
def _round_up(x, m):
    return ((x + m - 1) // m) * m


def _choose_block_steps(steps, n_nodes):
    """Largest step-block keeping PB = block_steps*n_nodes <= ~256 node rows
    (bounds both a_blk VMEM and the redundant work in the block-diagonal
    aggregation), with a preference for an even number of grid blocks so the
    "parallel" grid axis balances across v7x's 2 TensorCores."""
    cap = max(8, (256 // max(1, n_nodes)) // 8 * 8)
    cap = min(cap, _round_up(steps, 8))
    if -(-steps // cap) <= 1:
        return cap
    ts = cap
    while ts >= max(8, cap // 2):
        if (-(-steps // ts)) % 2 == 0:
            return ts
        ts -= 8
    return cap


def build_block_adjacency(adj, block_steps, phases, num_cpu):
    """Block-diagonal (per-step) adjacency, permuted to the kernel's
    (phase, step, cpu) row order.  Depends only on (adj, block_steps, shapes):
    compute it ONCE outside the hot loop and pass via block_adj=."""
    adj = adj.astype(jnp.float32)
    p = jnp.arange(phases).reshape(phases, 1, 1)
    s = jnp.arange(block_steps).reshape(1, block_steps, 1)
    c = jnp.arange(num_cpu).reshape(1, 1, num_cpu)
    node = jnp.broadcast_to(c * phases + p, (phases, block_steps, num_cpu)).reshape(-1)
    step = jnp.broadcast_to(s + 0 * (p + c), (phases, block_steps, num_cpu)).reshape(-1)
    same_step = (step[:, None] == step[None, :]).astype(adj.dtype)
    return adj[node[:, None], node[None, :]] * same_step


def _prep_params(gnn_params, mlp_params, gnn_size, phases):
    """Fuse each GNN layer's (W_self, W_neigh) into one (in, 2G) matrix and its
    biases into (1, 2G); reshape the first MLP weight to per-phase (2G, H)
    blocks; lay the value head out as a (1, H) row."""
    G = gnn_size
    flat = []
    for ws, bs, wn, bn in gnn_params:
        flat.append(jnp.concatenate([ws, wn], axis=1))     # (in, 2G)
        flat.append(jnp.concatenate([bs, bn], axis=1))     # (1, 2G)
    w1, b1 = mlp_params[0], mlp_params[1]
    H = w1.shape[1]
    assert w1.shape[0] == phases * 2 * G
    flat.append(w1.reshape(phases, 2 * G, H))
    flat.append(b1)
    rest = mlp_params[2:]
    for i in range(0, len(rest) - 2, 2):
        flat += [rest[i], rest[i + 1]]
    w_out, b_out = rest[-2], rest[-1]
    flat += [w_out.reshape(1, -1), b_out.reshape(1, 1)]
    return flat


# -----------------------------------------------------------------------------
# Forward pass
# -----------------------------------------------------------------------------
def gnn_critic_forward(obs, adj, gnn_params, mlp_params, *,
                       gnn_size, mlp_size, mlp_activation="tanh",
                       block_steps=None, block_adj=None):
    """obs: (steps, num_cpu, phases, features) -> value (steps, num_cpu, 1)."""
    obs = obs.astype(jnp.float32)
    steps, num_cpu, phases, features = obs.shape
    n_nodes = num_cpu * phases
    n_gnn_layers = len(gnn_params)
    mlp_n_layers = (len(mlp_params) - 2) // 2
    assert n_gnn_layers >= 1 and mlp_n_layers >= 1
    # Lane slices / concats inside the kernel sit on gnn_size boundaries.
    assert gnn_size % 8 == 0, "gnn_size must be a multiple of 8"
    # The torch reference reshapes to (steps, num_cpu, grp, 2*gnn_size*phases);
    # the module's shape bookkeeping only works when grp == 1.
    assert (n_nodes * 2 * gnn_size) == num_cpu * (2 * gnn_size * phases), \
        "GNNCritic requires num_cpu*phases nodes regrouping exactly to grp == 1"

    ts = block_steps if block_steps is not None else _choose_block_steps(steps, n_nodes)
    assert ts % 8 == 0
    sp = _round_up(steps, ts)
    num_blocks = sp // ts
    B2 = ts * num_cpu
    PB = phases * B2

    # (steps, cpu, phase, F) -> (phase, step*cpu, F); zero-pad steps to sp.
    # (Padded steps are computed and discarded — harmless, inputs are zeros.)
    h = jnp.transpose(obs, (2, 0, 1, 3)).reshape(phases, steps * num_cpu, features)
    if sp > steps:
        h = jnp.pad(h, ((0, 0), (0, (sp - steps) * num_cpu), (0, 0)))

    if block_adj is None:
        block_adj = build_block_adjacency(adj, ts, phases, num_cpu)
    a_blk = block_adj.astype(jnp.float32)
    assert a_blk.shape == (PB, PB), (a_blk.shape, (PB, PB))

    flat_params = _prep_params(gnn_params, mlp_params, gnn_size, phases)

    kernel = _make_fused_kernel(
        n_gnn_layers=n_gnn_layers, gnn_size=gnn_size, phases=phases,
        num_cpu=num_cpu, block_steps=ts, features=features,
        mlp_n_layers=mlp_n_layers, mlp_activation=mlp_activation)

    def _full_spec(arr):
        nd = arr.ndim
        return pl.BlockSpec(arr.shape, lambda i, _nd=nd: (0,) * _nd)

    in_specs = (
        [_full_spec(a_blk),
         pl.BlockSpec((phases, B2, features), lambda i: (0, i, 0))]
        + [_full_spec(p) for p in flat_params])
    # Lane-dense output: each grid block writes one (1, 1, B2) row.
    out_specs = pl.BlockSpec((1, 1, B2), lambda i: (i, 0, 0))

    # Advisory cost estimate for the XLA scheduler.
    flops, fin, rows = 0, features, sp * n_nodes
    for _ in range(n_gnn_layers):
        flops += 2 * rows * fin * 2 * gnn_size            # fused weight matmul
        flops += 2 * rows * PB * gnn_size                 # block-diag aggregation
        fin = 2 * gnn_size
    rows2, d = sp * num_cpu, fin * phases
    for _ in range(mlp_n_layers):
        flops += 2 * rows2 * d * mlp_size
        d = mlp_size
    flops += 2 * rows2 * mlp_size
    transcend = rows2 * mlp_size * mlp_n_layers if mlp_activation == "tanh" else 0
    bytes_accessed = 4 * (h.size + a_blk.size
                          + sum(int(p.size) for p in flat_params) + sp * num_cpu)

    out = pl.pallas_call(
        kernel,
        out_shape=jax.ShapeDtypeStruct((num_blocks, 1, B2), jnp.float32),
        grid=(num_blocks,),
        in_specs=in_specs,
        out_specs=out_specs,
        compiler_params=pltpu.CompilerParams(
            dimension_semantics=("parallel",),
            vmem_limit_bytes=32 * 1024 * 1024),
        cost_estimate=pl.CostEstimate(
            flops=int(flops), transcendentals=int(transcend),
            bytes_accessed=int(bytes_accessed)),
    )(a_blk, h, *flat_params)

    return out.reshape(sp * num_cpu)[: steps * num_cpu].reshape(steps, num_cpu, 1)


# -----------------------------------------------------------------------------
# Parameter construction, adjacency, pure-JAX reference
# -----------------------------------------------------------------------------
def init_gnn_critic_params(key, obs_dim, gnn_n_layers, gnn_size,
                           mlp_n_layers, mlp_size):
    phases, features = obs_dim

    def linear(key, fan_in, fan_out):
        kw, kb = jax.random.split(key)
        scale = 1.0 / jnp.sqrt(jnp.float32(fan_in))
        w = jax.random.normal(kw, (fan_in, fan_out), jnp.float32) * scale
        b = jax.random.normal(kb, (1, fan_out), jnp.float32) * 0.01
        return w, b

    gnn_params, in_size = [], features
    for _ in range(gnn_n_layers):
        key, k1, k2 = jax.random.split(key, 3)
        ws, bs = linear(k1, in_size, gnn_size)
        wn, bn = linear(k2, in_size, gnn_size)
        gnn_params.append((ws, bs, wn, bn))
        in_size = 2 * gnn_size

    mlp_params, d = [], in_size * phases
    for _ in range(mlp_n_layers):
        key, k = jax.random.split(key)
        w, b = linear(k, d, mlp_size)
        mlp_params.extend([w, b])
        d = mlp_size
    key, k = jax.random.split(key)
    w, b = linear(k, d, 1)
    mlp_params.extend([w, b])
    return gnn_params, mlp_params


def make_ring_adjacency(n):
    """Row-normalized ring graph with self loops (mean aggregation)."""
    idx = jnp.arange(n)
    a = (jnp.zeros((n, n), jnp.float32)
         .at[idx, idx].set(1.0)
         .at[idx, (idx + 1) % n].set(1.0)
         .at[idx, (idx - 1) % n].set(1.0))
    return a / jnp.sum(a, axis=1, keepdims=True)


def _reference_forward(obs, adj, gnn_params, mlp_params, mlp_activation):
    steps, num_cpu, phases, features = obs.shape
    n = num_cpu * phases
    act = jnp.tanh if mlp_activation == "tanh" else jax.nn.relu
    h = obs.reshape(steps, n, features)
    for ws, bs, wn, bn in gnn_params:
        h_self = h @ ws + bs
        h_neigh = jnp.einsum("mn,snf->smf", adj, h) @ wn + bn
        h = jax.nn.relu(jnp.concatenate([h_self, h_neigh], axis=-1))
    y = h.reshape(steps, num_cpu, -1, h.shape[-1] * phases)
    n_hidden = (len(mlp_params) - 2) // 2
    for i in range(n_hidden):
        y = act(y @ mlp_params[2 * i] + mlp_params[2 * i + 1])
    v = y @ mlp_params[-2] + mlp_params[-1]
    return jnp.squeeze(v, -1)          # (steps, num_cpu, 1)


# -----------------------------------------------------------------------------
# Demo / smoke test
# -----------------------------------------------------------------------------
if __name__ == "__main__":
    steps, num_cpu, phases, features = 20, 2, 4, 8
    gnn_n_layers, gnn_size = 2, 16
    mlp_n_layers, mlp_size = 2, 32
    mlp_activation = "tanh"

    key = jax.random.PRNGKey(0)
    key, k_obs, k_param = jax.random.split(key, 3)
    obs = jax.random.normal(k_obs, (steps, num_cpu, phases, features), jnp.float32)
    n_nodes = num_cpu * phases
    adj = make_ring_adjacency(n_nodes)
    gnn_params, mlp_params = init_gnn_critic_params(
        k_param, (phases, features), gnn_n_layers, gnn_size, mlp_n_layers, mlp_size)

    block_steps = 8                                         # 3 grid blocks + padding path
    # Hoisted out of the hot path: built once, reused across forward calls.
    a_blk = build_block_adjacency(adj, block_steps, phases, num_cpu)
    jax.block_until_ready(a_blk)

    fwd = jax.jit(functools.partial(
        gnn_critic_forward, gnn_size=gnn_size, mlp_size=mlp_size,
        mlp_activation=mlp_activation, block_steps=block_steps))

    value = fwd(obs, adj, gnn_params, mlp_params, block_adj=a_blk)
    jax.block_until_ready(value)
    assert value.shape == (steps, num_cpu, 1), value.shape
    assert value.dtype == jnp.float32

    ref = _reference_forward(obs, adj, gnn_params, mlp_params, mlp_activation)
    max_err = float(jnp.max(jnp.abs(value - ref)))
    assert jnp.allclose(value, ref, atol=1e-2, rtol=1e-2), max_err
    print("KERNEL_OK")
</pallas_src>

<mosaic_0001>
module attributes {stable_mosaic.version = 11 : i64} {
  func.func @kernel(%arg0: i32, %arg1: memref<64x64xf32, #tpu.memory_space<vmem>>, %arg2: memref<4x16x8xf32, #tpu.memory_space<vmem>>, %arg3: memref<8x32xf32, #tpu.memory_space<vmem>>, %arg4: memref<1x32xf32, #tpu.memory_space<vmem>>, %arg5: memref<32x32xf32, #tpu.memory_space<vmem>>, %arg6: memref<1x32xf32, #tpu.memory_space<vmem>>, %arg7: memref<4x32x32xf32, #tpu.memory_space<vmem>>, %arg8: memref<1x32xf32, #tpu.memory_space<vmem>>, %arg9: memref<32x32xf32, #tpu.memory_space<vmem>>, %arg10: memref<1x32xf32, #tpu.memory_space<vmem>>, %arg11: memref<1x32xf32, #tpu.memory_space<vmem>>, %arg12: memref<1x1xf32, #tpu.memory_space<vmem>>, %arg13: memref<1x1x16xf32, #tpu.memory_space<vmem>>) attributes {dimension_semantics = [#tpu.dimension_semantics<parallel>], iteration_bounds = array<i64: 3>, scalar_prefetch = 0 : i64, scratch_operands = 0 : i64, tpu.core_type = #tpu.core_type<tc>, window_params = [{pipeline_mode = #tpu.pipeline_mode<synchronous>, transform_indices = @transform_0, window_bounds = array<i64: 64, 64>}, {transform_indices = @transform_1, window_bounds = array<i64: 4, 16, 8>}, {pipeline_mode = #tpu.pipeline_mode<synchronous>, transform_indices = @transform_2, window_bounds = array<i64: 8, 32>}, {pipeline_mode = #tpu.pipeline_mode<synchronous>, transform_indices = @transform_3, window_bounds = array<i64: 1, 32>}, {pipeline_mode = #tpu.pipeline_mode<synchronous>, transform_indices = @transform_4, window_bounds = array<i64: 32, 32>}, {pipeline_mode = #tpu.pipeline_mode<synchronous>, transform_indices = @transform_5, window_bounds = array<i64: 1, 32>}, {pipeline_mode = #tpu.pipeline_mode<synchronous>, transform_indices = @transform_6, window_bounds = array<i64: 4, 32, 32>}, {pipeline_mode = #tpu.pipeline_mode<synchronous>, transform_indices = @transform_7, window_bounds = array<i64: 1, 32>}, {pipeline_mode = #tpu.pipeline_mode<synchronous>, transform_indices = @transform_8, window_bounds = array<i64: 32, 32>}, {pipeline_mode = #tpu.pipeline_mode<synchronous>, transform_indices = @transform_9, window_bounds = array<i64: 1, 32>}, {pipeline_mode = #tpu.pipeline_mode<synchronous>, transform_indices = @transform_10, window_bounds = array<i64: 1, 32>}, {pipeline_mode = #tpu.pipeline_mode<synchronous>, transform_indices = @transform_11, window_bounds = array<i64: 1, 1>}, {transform_indices = @transform_12, window_bounds = array<i64: 1, 1, 16>}]} {
    %c0 = arith.constant 0 : index
    %c0_0 = arith.constant 0 : index
    %0 = vector.load %arg1[%c0, %c0_0] : memref<64x64xf32, #tpu.memory_space<vmem>>, vector<64x64xf32>
    %c0_1 = arith.constant 0 : index
    %c0_2 = arith.constant 0 : index
    %c0_3 = arith.constant 0 : index
    %1 = vector.load %arg2[%c0_1, %c0_2, %c0_3] : memref<4x16x8xf32, #tpu.memory_space<vmem>>, vector<4x16x8xf32>
    %2 = vector.shape_cast %1 : vector<4x16x8xf32> to vector<64x8xf32>
    %c0_4 = arith.constant 0 : index
    %c0_5 = arith.constant 0 : index
    %3 = vector.load %arg3[%c0_4, %c0_5] : memref<8x32xf32, #tpu.memory_space<vmem>>, vector<8x32xf32>
    %cst = arith.constant dense<0.000000e+00> : vector<64x32xf32>
    %4 = tpu.matmul %2, %3, %cst {dimension_numbers = #tpu.dot_dimension_numbers<[1], [0], [0], [1], [0, 0, 1, 1], [], []>} : vector<64x8xf32>, vector<8x32xf32>, vector<64x32xf32> -> vector<64x32xf32>
    %5 = vector.extract_strided_slice %4 {offsets = [0, 16], sizes = [64, 16], strides = [1, 1]} : vector<64x32xf32> to vector<64x16xf32>
    %cst_6 = arith.constant dense<0.000000e+00> : vector<64x16xf32>
    %6 = tpu.matmul %0, %5, %cst_6 {dimension_numbers = #tpu.dot_dimension_numbers<[1], [0], [0], [1], [0, 0, 1, 1], [], []>} : vector<64x64xf32>, vector<64x16xf32>, vector<64x16xf32> -> vector<64x16xf32>
    %7 = vector.extract_strided_slice %4 {offsets = [0, 0], sizes = [64, 16], strides = [1, 1]} : vector<64x32xf32> to vector<64x16xf32>
    %8 = tpu.concatenate %7, %6 in 1 : vector<64x16xf32>, vector<64x16xf32> -> vector<64x32xf32>
    %c0_7 = arith.constant 0 : index
    %c0_8 = arith.constant 0 : index
    %9 = vector.load %arg4[%c0_7, %c0_8] : memref<1x32xf32, #tpu.memory_space<vmem>>, vector<1x32xf32>
    %10 = vector.broadcast %9 : vector<1x32xf32> to vector<64x32xf32>
    %11 = arith.addf %8, %10 : vector<64x32xf32>
    %cst_9 = arith.constant 0.000000e+00 : f32
    %12 = vector.broadcast %cst_9 : f32 to vector<64x32xf32>
    %13 = arith.maximumf %11, %12 : vector<64x32xf32>
    %c0_10 = arith.constant 0 : index
    %c0_11 = arith.constant 0 : index
    %14 = vector.load %arg5[%c0_10, %c0_11] : memref<32x32xf32, #tpu.memory_space<vmem>>, vector<32x32xf32>
    %cst_12 = arith.constant dense<0.000000e+00> : vector<64x32xf32>
    %15 = tpu.matmul %13, %14, %cst_12 {dimension_numbers = #tpu.dot_dimension_numbers<[1], [0], [0], [1], [0, 0, 1, 1], [], []>} : vector<64x32xf32>, vector<32x32xf32>, vector<64x32xf32> -> vector<64x32xf32>
    %16 = vector.extract_strided_slice %15 {offsets = [0, 16], sizes = [64, 16], strides = [1, 1]} : vector<64x32xf32> to vector<64x16xf32>
    %cst_13 = arith.constant dense<0.000000e+00> : vector<64x16xf32>
    %17 = tpu.matmul %0, %16, %cst_13 {dimension_numbers = #tpu.dot_dimension_numbers<[1], [0], [0], [1], [0, 0, 1, 1], [], []>} : vector<64x64xf32>, vector<64x16xf32>, vector<64x16xf32> -> vector<64x16xf32>
    %18 = vector.extract_strided_slice %15 {offsets = [0, 0], sizes = [64, 16], strides = [1, 1]} : vector<64x32xf32> to vector<64x16xf32>
    %19 = tpu.concatenate %18, %17 in 1 : vector<64x16xf32>, vector<64x16xf32> -> vector<64x32xf32>
    %c0_14 = arith.constant 0 : index
    %c0_15 = arith.constant 0 : index
    %20 = vector.load %arg6[%c0_14, %c0_15] : memref<1x32xf32, #tpu.memory_space<vmem>>, vector<1x32xf32>
    %21 = vector.broadcast %20 : vector<1x32xf32> to vector<64x32xf32>
    %22 = arith.addf %19, %21 : vector<64x32xf32>
    %cst_16 = arith.constant 0.000000e+00 : f32
    %23 = vector.broadcast %cst_16 : f32 to vector<64x32xf32>
    %24 = arith.maximumf %22, %23 : vector<64x32xf32>
    %25 = vector.extract_strided_slice %24 {offsets = [0, 0], sizes = [16, 32], strides = [1, 1]} : vector<64x32xf32> to vector<16x32xf32>
    %c0_17 = arith.constant 0 : index
    %c0_18 = arith.constant 0 : index
    %c0_19 = arith.constant 0 : index
    %26 = vector.load %arg7[%c0_17, %c0_18, %c0_19] : memref<4x32x32xf32, #tpu.memory_space<vmem>>, vector<1x32x32xf32>
    %27 = vector.shape_cast %26 : vector<1x32x32xf32> to vector<32x32xf32>
    %cst_20 = arith.constant dense<0.000000e+00> : vector<16x32xf32>
    %28 = tpu.matmul %25, %27, %cst_20 {dimension_numbers = #tpu.dot_dimension_numbers<[1], [0], [0], [1], [0, 0, 1, 1], [], []>} : vector<16x32xf32>, vector<32x32xf32>, vector<16x32xf32> -> vector<16x32xf32>
    %29 = vector.extract_strided_slice %24 {offsets = [16, 0], sizes = [16, 32], strides = [1, 1]} : vector<64x32xf32> to vector<16x32xf32>
    %c1 = arith.constant 1 : index
    %c0_21 = arith.constant 0 : index
    %c0_22 = arith.constant 0 : index
    %30 = vector.load %arg7[%c1, %c0_21, %c0_22] : memref<4x32x32xf32, #tpu.memory_space<vmem>>, vector<1x32x32xf32>
    %31 = vector.shape_cast %30 : vector<1x32x32xf32> to vector<32x32xf32>
    %cst_23 = arith.constant dense<0.000000e+00> : vector<16x32xf32>
    %32 = tpu.matmul %29, %31, %cst_23 {dimension_numbers = #tpu.dot_dimension_numbers<[1], [0], [0], [1], [0, 0, 1, 1], [], []>} : vector<16x32xf32>, vector<32x32xf32>, vector<16x32xf32> -> vector<16x32xf32>
    %33 = arith.addf %28, %32 : vector<16x32xf32>
    %34 = vector.extract_strided_slice %24 {offsets = [32, 0], sizes = [16, 32], strides = [1, 1]} : vector<64x32xf32> to vector<16x32xf32>
    %c2 = arith.constant 2 : index
    %c0_24 = arith.constant 0 : index
    %c0_25 = arith.constant 0 : index
    %35 = vector.load %arg7[%c2, %c0_24, %c0_25] : memref<4x32x32xf32, #tpu.memory_space<vmem>>, vector<1x32x32xf32>
    %36 = vector.shape_cast %35 : vector<1x32x32xf32> to vector<32x32xf32>
    %cst_26 = arith.constant dense<0.000000e+00> : vector<16x32xf32>
    %37 = tpu.matmul %34, %36, %cst_26 {dimension_numbers = #tpu.dot_dimension_numbers<[1], [0], [0], [1], [0, 0, 1, 1], [], []>} : vector<16x32xf32>, vector<32x32xf32>, vector<16x32xf32> -> vector<16x32xf32>
    %38 = arith.addf %33, %37 : vector<16x32xf32>
    %39 = vector.extract_strided_slice %24 {offsets = [48, 0], sizes = [16, 32], strides = [1, 1]} : vector<64x32xf32> to vector<16x32xf32>
    %c3 = arith.constant 3 : index
    %c0_27 = arith.constant 0 : index
    %c0_28 = arith.constant 0 : index
    %40 = vector.load %arg7[%c3, %c0_27, %c0_28] : memref<4x32x32xf32, #tpu.memory_space<vmem>>, vector<1x32x32xf32>
    %41 = vector.shape_cast %40 : vector<1x32x32xf32> to vector<32x32xf32>
    %cst_29 = arith.constant dense<0.000000e+00> : vector<16x32xf32>
    %42 = tpu.matmul %39, %41, %cst_29 {dimension_numbers = #tpu.dot_dimension_numbers<[1], [0], [0], [1], [0, 0, 1, 1], [], []>} : vector<16x32xf32>, vector<32x32xf32>, vector<16x32xf32> -> vector<16x32xf32>
    %43 = arith.addf %38, %42 : vector<16x32xf32>
    %c0_30 = arith.constant 0 : index
    %c0_31 = arith.constant 0 : index
    %44 = vector.load %arg8[%c0_30, %c0_31] : memref<1x32xf32, #tpu.memory_space<vmem>>, vector<1x32xf32>
    %45 = vector.broadcast %44 : vector<1x32xf32> to vector<16x32xf32>
    %46 = arith.addf %43, %45 : vector<16x32xf32>
    %47 = math.tanh %46 : vector<16x32xf32>
    %c0_32 = arith.constant 0 : index
    %c0_33 = arith.constant 0 : index
    %48 = vector.load %arg9[%c0_32, %c0_33] : memref<32x32xf32, #tpu.memory_space<vmem>>, vector<32x32xf32>
    %cst_34 = arith.constant dense<0.000000e+00> : vector<16x32xf32>
    %49 = tpu.matmul %47, %48, %cst_34 {dimension_numbers = #tpu.dot_dimension_numbers<[1], [0], [0], [1], [0, 0, 1, 1], [], []>} : vector<16x32xf32>, vector<32x32xf32>, vector<16x32xf32> -> vector<16x32xf32>
    %c0_35 = arith.constant 0 : index
    %c0_36 = arith.constant 0 : index
    %50 = vector.load %arg10[%c0_35, %c0_36] : memref<1x32xf32, #tpu.memory_space<vmem>>, vector<1x32xf32>
    %51 = vector.broadcast %50 : vector<1x32xf32> to vector<16x32xf32>
    %52 = arith.addf %49, %51 : vector<16x32xf32>
    %53 = math.tanh %52 : vector<16x32xf32>
    %c0_37 = arith.constant 0 : index
    %c0_38 = arith.constant 0 : index
    %54 = vector.load %arg11[%c0_37, %c0_38] : memref<1x32xf32, #tpu.memory_space<vmem>>, vector<1x32xf32>
    "tpu.trace_start"() <{level = 10 : i32, message = "oh,bh->ob"}> : () -> ()
    %cst_39 = arith.constant dense<0.000000e+00> : vector<1x16xf32>
    %55 = tpu.matmul %54, %53, %cst_39 {dimension_numbers = #tpu.dot_dimension_numbers<[1], [1], [0], [0], [0, 0, 1, 0], [], []>} : vector<1x32xf32>, vector<16x32xf32>, vector<1x16xf32> -> vector<1x16xf32>
    "tpu.trace_stop"() : () -> ()
    %c0_40 = arith.constant 0 : index
    %c0_41 = arith.constant 0 : index
    %56 = vector.load %arg12[%c0_40, %c0_41] : memref<1x1xf32, #tpu.memory_space<vmem>>, vector<1x1xf32>
    %57 = vector.broadcast %56 : vector<1x1xf32> to vector<1x16xf32>
    %58 = arith.addf %55, %57 : vector<1x16xf32>
    %59 = vector.shape_cast %58 : vector<1x16xf32> to vector<1x1x16xf32>
    %c0_42 = arith.constant 0 : index
    %c0_43 = arith.constant 0 : index
    %c0_44 = arith.constant 0 : index
    %60 = vector.load %arg13[%c0_42, %c0_43, %c0_44] : memref<1x1x16xf32, #tpu.memory_space<vmem>>, vector<1x1x16xf32>
    tpu.vector_store %arg13[%c0_42, %c0_43, %c0_44], %59 {strides = array<i32>} : memref<1x1x16xf32, #tpu.memory_space<vmem>>, vector<1x1x16xf32>,
    return
  }
  func.func @transform_0(%arg0: i32) -> (i32, i32) {
    %c0_i32 = arith.constant 0 : i32
    %c0_i32_0 = arith.constant 0 : i32
    %c0_i32_1 = arith.constant 0 : i32
    return %c0_i32, %c0_i32_0 : i32, i32
  }
  func.func @transform_1(%arg0: i32) -> (i32, i32, i32) {
    %c0_i32 = arith.constant 0 : i32
    %c0_i32_0 = arith.constant 0 : i32
    %c0_i32_1 = arith.constant 0 : i32
    return %c0_i32, %arg0, %c0_i32_0 : i32, i32, i32
  }
  func.func @transform_2(%arg0: i32) -> (i32, i32) {
    %c0_i32 = arith.constant 0 : i32
    %c0_i32_0 = arith.constant 0 : i32
    %c0_i32_1 = arith.constant 0 : i32
    return %c0_i32, %c0_i32_0 : i32, i32
  }
  func.func @transform_3(%arg0: i32) -> (i32, i32) {
    %c0_i32 = arith.constant 0 : i32
    %c0_i32_0 = arith.constant 0 : i32
    %c0_i32_1 = arith.constant 0 : i32
    return %c0_i32, %c0_i32_0 : i32, i32
  }
  func.func @transform_4(%arg0: i32) -> (i32, i32) {
    %c0_i32 = arith.constant 0 : i32
    %c0_i32_0 = arith.constant 0 : i32
    %c0_i32_1 = arith.constant 0 : i32
    return %c0_i32, %c0_i32_0 : i32, i32
  }
  func.func @transform_5(%arg0: i32) -> (i32, i32) {
    %c0_i32 = arith.constant 0 : i32
    %c0_i32_0 = arith.constant 0 : i32
    %c0_i32_1 = arith.constant 0 : i32
    return %c0_i32, %c0_i32_0 : i32, i32
  }
  func.func @transform_6(%arg0: i32) -> (i32, i32, i32) {
    %c0_i32 = arith.constant 0 : i32
    %c0_i32_0 = arith.constant 0 : i32
    %c0_i32_1 = arith.constant 0 : i32
    %c0_i32_2 = arith.constant 0 : i32
    return %c0_i32, %c0_i32_0, %c0_i32_1 : i32, i32, i32
  }
  func.func @transform_7(%arg0: i32) -> (i32, i32) {
    %c0_i32 = arith.constant 0 : i32
    %c0_i32_0 = arith.constant 0 : i32
    %c0_i32_1 = arith.constant 0 : i32
    return %c0_i32, %c0_i32_0 : i32, i32
  }
  func.func @transform_8(%arg0: i32) -> (i32, i32) {
    %c0_i32 = arith.constant 0 : i32
    %c0_i32_0 = arith.constant 0 : i32
    %c0_i32_1 = arith.constant 0 : i32
    return %c0_i32, %c0_i32_0 : i32, i32
  }
  func.func @transform_9(%arg0: i32) -> (i32, i32) {
    %c0_i32 = arith.constant 0 : i32
    %c0_i32_0 = arith.constant 0 : i32
    %c0_i32_1 = arith.constant 0 : i32
    return %c0_i32, %c0_i32_0 : i32, i32
  }
  func.func @transform_10(%arg0: i32) -> (i32, i32) {
    %c0_i32 = arith.constant 0 : i32
    %c0_i32_0 = arith.constant 0 : i32
    %c0_i32_1 = arith.constant 0 : i32
    return %c0_i32, %c0_i32_0 : i32, i32
  }
  func.func @transform_11(%arg0: i32) -> (i32, i32) {
    %c0_i32 = arith.constant 0 : i32
    %c0_i32_0 = arith.constant 0 : i32
    %c0_i32_1 = arith.constant 0 : i32
    return %c0_i32, %c0_i32_0 : i32, i32
  }
  func.func @transform_12(%arg0: i32) -> (i32, i32, i32) {
    %c0_i32 = arith.constant 0 : i32
    %c0_i32_0 = arith.constant 0 : i32
    %c0_i32_1 = arith.constant 0 : i32
    return %arg0, %c0_i32, %c0_i32_0 : i32, i32, i32
  }
}

</mosaic_0001>

<llo_original>
// kernel: gnn_critic_forward.1
$region0: #{gnn_critic_forward.1}
  #allocation0 [shape = 'u32[]', space=smem, size = 0x4, offset = 0x4, fixed_abs, tag = 'smem constant byte address 0x4 - core index']
  #allocation1 [shape = 'u32[72,128]{1,0:T(1,128)}', space=vmem, size = 0x9000, scoped, tag = 'internal scratch']
  #allocation2 [shape = 'f32[1,1]{1,0:T(1,128)S(1)}', space=vmem, size = 0x200, scoped, tag = 'scoped memory for gnn_critic_forward.1']
  %s0 = inlined_call_operand.vmem [shape: f32[64,64], index: 0, kind: input, shape index: {}]
  %s1 = inlined_call_operand.vmem [shape: f32[4,48,8], index: 1, kind: input, shape index: {}]
  %s2 = inlined_call_operand.vmem [shape: f32[8,32], index: 2, kind: input, shape index: {}]
  %s3 = inlined_call_operand.vmem [shape: f32[1,32], index: 3, kind: input, shape index: {}]
  %s4 = inlined_call_operand.vmem [shape: f32[32,32], index: 4, kind: input, shape index: {}]
  %s5 = inlined_call_operand.vmem [shape: f32[1,32], index: 5, kind: input, shape index: {}]
  %s6 = inlined_call_operand.vmem [shape: f32[4,32,32], index: 6, kind: input, shape index: {}]
  %s7 = inlined_call_operand.vmem [shape: f32[1,32], index: 7, kind: input, shape index: {}]
  %s8 = inlined_call_operand.vmem [shape: f32[32,32], index: 8, kind: input, shape index: {}]
  %s9 = inlined_call_operand.vmem [shape: f32[1,32], index: 9, kind: input, shape index: {}]
  %s10 = inlined_call_operand.vmem [shape: f32[1,32], index: 10, kind: input, shape index: {}]
  %s11 = inlined_call_operand.<no memory space> [shape: f32[1,1], index: 11, kind: input, shape index: {}]
  %s12 = inlined_call_operand.vmem [shape: f32[3,1,16], index: 12, kind: output, shape index: {}]
  %s13 = sld [smem:[#allocation0]]
  $region119: #{gnn_critic_forward.1} parent=0
    _
  %s15 = ssub.s32 1, %s13
  %s16 = scalar_select 0, %s15, %s13
  %v17 = vstv %s11
  %18 = vst [vmem:[#allocation2] sm:$0x1] %v17
  $region1: #{gnn_critic_forward.1} parent=0
    #allocation3 [shape = 'u8[65536]{0}', space=vmem, size = 0x10000, scoped, tag = 'input window, operand 1']
    loop: start=0, step=1, limit=5
    $region2: #{gnn_critic_forward.1} parent=1 // loop_pre_header
      _
    $region3: #{gnn_critic_forward.1} parent=1 // loop_header
      %s20 = sphi 0, %s24
      %p21 = scmp.ge.s32.totalorder %s20, 5
      %s28 = sphi 0, %s28
      %s30 = sphi 0, %s28
      %s31 = sphi 0, %s30
      %s45 = sphi 0, %s31
      %s51 = sphi 0, %s53
      %s54 = sphi 0, %s51
      %s55 = sphi 0, %s54
      %s71 = sphi 0, %s55
      %s75 = sphi 0, %s75
      %s77 = sphi 0, %s75
      %s78 = sphi 0, %s77
      %s92 = sphi 0, %s78
      %s96 = sphi 0, %s96
      %s98 = sphi 0, %s96
      %s99 = sphi 0, %s98
      %s113 = sphi 0, %s99
      %s117 = sphi 0, %s117
      %s119 = sphi 0, %s117
      %s120 = sphi 0, %s119
      %s134 = sphi 0, %s120
      %s138 = sphi 0, %s138
      %s140 = sphi 0, %s138
      %s141 = sphi 0, %s140
      %s155 = sphi 0, %s141
      %s159 = sphi 0, %s159
      %s161 = sphi 0, %s159
      %s162 = sphi 0, %s161
      %s176 = sphi 0, %s162
      %s180 = sphi 0, %s180
      %s182 = sphi 0, %s180
      %s183 = sphi 0, %s182
      %s197 = sphi 0, %s183
      %s201 = sphi 0, %s201
      %s203 = sphi 0, %s201
      %s204 = sphi 0, %s203
      %s218 = sphi 0, %s204
      %s222 = sphi 0, %s222
      %s224 = sphi 0, %s222
      %s225 = sphi 0, %s224
      %s239 = sphi 0, %s225
      %s243 = sphi 0, %s243
      %s245 = sphi 0, %s243
      %s246 = sphi 0, %s245
      %s260 = sphi 0, %s246
      %s264 = sphi 0, %s264
      %s266 = sphi 0, %s264
      %s267 = sphi 0, %s266
      %s281 = sphi 0, %s267
      %s287 = sphi 0, %s289
      %s290 = sphi 0, %s287
      %s291 = sphi 0, %s290
      %s307 = sphi 0, %s291
    $region4: #{gnn_critic_forward.1} parent=1 // loop_header_branch
      %23 = sbr.rel (%p21) target = $region8
    $region5: #{gnn_critic_forward.1} parent=1 // loop_body
      %s25 = ssub.s32 %s20, 1
      %s26 = ssub.s32 %s20, 2
      %s27 = sadd.s32 %s20, 1
      %s29 = sadd.s32 %s28, 1
      %p32 = scmp.eq.s32.totalorder %s20, 2
      %p33 = scmp.ne.s32.totalorder %s28, %s30
      %p34 = scmp.eq.s32.totalorder %s20, 0
      %p35 = por %p33, %p34
      %p36 = scmp.ne.s32.totalorder %s28, %s30
      %p37 = scmp.eq.s32.totalorder %s25, 2
      %p38 = por %p36, %p37
      %p39 = scmp.ne.s32.totalorder %s30, %s31
      %p40 = scmp.eq.s32.totalorder %s25, 0
      %p41 = por %p39, %p40
      %p42 = scmp.ne.s32.totalorder %s30, %s31
      %p43 = scmp.eq.s32.totalorder %s26, 2
      %p44 = por %p42, %p43
      %p46 = scmp.ne.s32.totalorder %s31, %s45
      %p47 = scmp.eq.s32.totalorder %s26, 0
      %p48 = por %p46, %p47
      %s49 = ssub.s32 %s20, %s27
      %p50 = scmp.eq.s32.totalorder %s49, 0
      %s52 = sadd.s32 %s51, 1
      %s53 = scalar_select %p50, %s51, %s52
      %p56 = pneg %p50
      %p57 = scmp.eq.s32.totalorder %s20, 2
      %p58 = por %p56, %p57
      %p59 = scmp.ne.s32.totalorder %s51, %s54
      %p60 = scmp.eq.s32.totalorder %s20, 0
      %p61 = por %p59, %p60
      %p62 = scmp.ne.s32.totalorder %s51, %s54
      %p63 = scmp.eq.s32.totalorder %s25, 2
      %p64 = por %p62, %p63
      %p65 = scmp.ne.s32.totalorder %s54, %s55
      %p66 = scmp.eq.s32.totalorder %s25, 0
      %p67 = por %p65, %p66
      %p68 = scmp.ne.s32.totalorder %s54, %s55
      %p69 = scmp.eq.s32.totalorder %s26, 2
      %p70 = por %p68, %p69
      %p72 = scmp.ne.s32.totalorder %s55, %s71
      %p73 = scmp.eq.s32.totalorder %s26, 0
      %p74 = por %p72, %p73
      %s76 = sadd.s32 %s75, 1
      %p79 = scmp.eq.s32.totalorder %s20, 2
      %p80 = scmp.ne.s32.totalorder %s75, %s77
      %p81 = scmp.eq.s32.totalorder %s20, 0
      %p82 = por %p80, %p81
      %p83 = scmp.ne.s32.totalorder %s75, %s77
      %p84 = scmp.eq.s32.totalorder %s25, 2
      %p85 = por %p83, %p84
      %p86 = scmp.ne.s32.totalorder %s77, %s78
      %p87 = scmp.eq.s32.totalorder %s25, 0
      %p88 = por %p86, %p87
      %p89 = scmp.ne.s32.totalorder %s77, %s78
      %p90 = scmp.eq.s32.totalorder %s26, 2
      %p91 = por %p89, %p90
      %p93 = scmp.ne.s32.totalorder %s78, %s92
      %p94 = scmp.eq.s32.totalorder %s26, 0
      %p95 = por %p93, %p94
      %s97 = sadd.s32 %s96, 1
      %p100 = scmp.eq.s32.totalorder %s20, 2
      %p101 = scmp.ne.s32.totalorder %s96, %s98
      %p102 = scmp.eq.s32.totalorder %s20, 0
      %p103 = por %p101, %p102
      %p104 = scmp.ne.s32.totalorder %s96, %s98
      %p105 = scmp.eq.s32.totalorder %s25, 2
      %p106 = por %p104, %p105
      %p107 = scmp.ne.s32.totalorder %s98, %s99
      %p108 = scmp.eq.s32.totalorder %s25, 0
      %p109 = por %p107, %p108
      %p110 = scmp.ne.s32.totalorder %s98, %s99
      %p111 = scmp.eq.s32.totalorder %s26, 2
      %p112 = por %p110, %p111
      %p114 = scmp.ne.s32.totalorder %s99, %s113
      %p115 = scmp.eq.s32.totalorder %s26, 0
      %p116 = por %p114, %p115
      %s118 = sadd.s32 %s117, 1
      %p121 = scmp.eq.s32.totalorder %s20, 2
      %p122 = scmp.ne.s32.totalorder %s117, %s119
      %p123 = scmp.eq.s32.totalorder %s20, 0
      %p124 = por %p122, %p123
      %p125 = scmp.ne.s32.totalorder %s117, %s119
      %p126 = scmp.eq.s32.totalorder %s25, 2
      %p127 = por %p125, %p126
      %p128 = scmp.ne.s32.totalorder %s119, %s120
      %p129 = scmp.eq.s32.totalorder %s25, 0
      %p130 = por %p128, %p129
      %p131 = scmp.ne.s32.totalorder %s119, %s120
      %p132 = scmp.eq.s32.totalorder %s26, 2
      %p133 = por %p131, %p132
      %p135 = scmp.ne.s32.totalorder %s120, %s134
      %p136 = scmp.eq.s32.totalorder %s26, 0
      %p137 = por %p135, %p136
      %s139 = sadd.s32 %s138, 1
      %p142 = scmp.eq.s32.totalorder %s20, 2
      %p143 = scmp.ne.s32.totalorder %s138, %s140
      %p144 = scmp.eq.s32.totalorder %s20, 0
      %p145 = por %p143, %p144
      %p146 = scmp.ne.s32.totalorder %s138, %s140
      %p147 = scmp.eq.s32.totalorder %s25, 2
      %p148 = por %p146, %p147
      %p149 = scmp.ne.s32.totalorder %s140, %s141
      %p150 = scmp.eq.s32.totalorder %s25, 0
      %p151 = por %p149, %p150
      %p152 = scmp.ne.s32.totalorder %s140, %s141
      %p153 = scmp.eq.s32.totalorder %s26, 2
      %p154 = por %p152, %p153
      %p156 = scmp.ne.s32.totalorder %s141, %s155
      %p157 = scmp.eq.s32.totalorder %s26, 0
      %p158 = por %p156, %p157
      %s160 = sadd.s32 %s159, 1
      %p163 = scmp.eq.s32.totalorder %s20, 2
      %p164 = scmp.ne.s32.totalorder %s159, %s161
      %p165 = scmp.eq.s32.totalorder %s20, 0
      %p166 = por %p164, %p165
      %p167 = scmp.ne.s32.totalorder %s159, %s161
      %p168 = scmp.eq.s32.totalorder %s25, 2
      %p169 = por %p167, %p168
      %p170 = scmp.ne.s32.totalorder %s161, %s162
      %p171 = scmp.eq.s32.totalorder %s25, 0
      %p172 = por %p170, %p171
      %p173 = scmp.ne.s32.totalorder %s161, %s162
      %p174 = scmp.eq.s32.totalorder %s26, 2
      %p175 = por %p173, %p174
      %p177 = scmp.ne.s32.totalorder %s162, %s176
      %p178 = scmp.eq.s32.totalorder %s26, 0
      %p179 = por %p177, %p178
      %s181 = sadd.s32 %s180, 1
      %p184 = scmp.eq.s32.totalorder %s20, 2
      %p185 = scmp.ne.s32.totalorder %s180, %s182
      %p186 = scmp.eq.s32.totalorder %s20, 0
      %p187 = por %p185, %p186
      %p188 = scmp.ne.s32.totalorder %s180, %s182
      %p189 = scmp.eq.s32.totalorder %s25, 2
      %p190 = por %p188, %p189
      %p191 = scmp.ne.s32.totalorder %s182, %s183
      %p192 = scmp.eq.s32.totalorder %s25, 0
      %p193 = por %p191, %p192
      %p194 = scmp.ne.s32.totalorder %s182, %s183
      %p195 = scmp.eq.s32.totalorder %s26, 2
      %p196 = por %p194, %p195
      %p198 = scmp.ne.s32.totalorder %s183, %s197
      %p199 = scmp.eq.s32.totalorder %s26, 0
      %p200 = por %p198, %p199
      %s202 = sadd.s32 %s201, 1
      %p205 = scmp.eq.s32.totalorder %s20, 2
      %p206 = scmp.ne.s32.totalorder %s201, %s203
      %p207 = scmp.eq.s32.totalorder %s20, 0
      %p208 = por %p206, %p207
      %p209 = scmp.ne.s32.totalorder %s201, %s203
      %p210 = scmp.eq.s32.totalorder %s25, 2
      %p211 = por %p209, %p210
      %p212 = scmp.ne.s32.totalorder %s203, %s204
      %p213 = scmp.eq.s32.totalorder %s25, 0
      %p214 = por %p212, %p213
      %p215 = scmp.ne.s32.totalorder %s203, %s204
      %p216 = scmp.eq.s32.totalorder %s26, 2
      %p217 = por %p215, %p216
      %p219 = scmp.ne.s32.totalorder %s204, %s218
      %p220 = scmp.eq.s32.totalorder %s26, 0
      %p221 = por %p219, %p220
      %s223 = sadd.s32 %s222, 1
      %p226 = scmp.eq.s32.totalorder %s20, 2
      %p227 = scmp.ne.s32.totalorder %s222, %s224
      %p228 = scmp.eq.s32.totalorder %s20, 0
      %p229 = por %p227, %p228
      %p230 = scmp.ne.s32.totalorder %s222, %s224
      %p231 = scmp.eq.s32.totalorder %s25, 2
      %p232 = por %p230, %p231
      %p233 = scmp.ne.s32.totalorder %s224, %s225
      %p234 = scmp.eq.s32.totalorder %s25, 0
      %p235 = por %p233, %p234
      %p236 = scmp.ne.s32.totalorder %s224, %s225
      %p237 = scmp.eq.s32.totalorder %s26, 2
      %p238 = por %p236, %p237
      %p240 = scmp.ne.s32.totalorder %s225, %s239
      %p241 = scmp.eq.s32.totalorder %s26, 0
      %p242 = por %p240, %p241
      %s244 = sadd.s32 %s243, 1
      %p247 = scmp.eq.s32.totalorder %s20, 2
      %p248 = scmp.ne.s32.totalorder %s243, %s245
      %p249 = scmp.eq.s32.totalorder %s20, 0
      %p250 = por %p248, %p249
      %p251 = scmp.ne.s32.totalorder %s243, %s245
      %p252 = scmp.eq.s32.totalorder %s25, 2
      %p253 = por %p251, %p252
      %p254 = scmp.ne.s32.totalorder %s245, %s246
      %p255 = scmp.eq.s32.totalorder %s25, 0
      %p256 = por %p254, %p255
      %p257 = scmp.ne.s32.totalorder %s245, %s246
      %p258 = scmp.eq.s32.totalorder %s26, 2
      %p259 = por %p257, %p258
      %p261 = scmp.ne.s32.totalorder %s246, %s260
      %p262 = scmp.eq.s32.totalorder %s26, 0
      %p263 = por %p261, %p262
      %s265 = sadd.s32 %s264, 1
      %p268 = scmp.eq.s32.totalorder %s20, 2
      %p269 = scmp.ne.s32.totalorder %s264, %s266
      %p270 = scmp.eq.s32.totalorder %s20, 0
      %p271 = por %p269, %p270
      %p272 = scmp.ne.s32.totalorder %s264, %s266
      %p273 = scmp.eq.s32.totalorder %s25, 2
      %p274 = por %p272, %p273
      %p275 = scmp.ne.s32.totalorder %s266, %s267
      %p276 = scmp.eq.s32.totalorder %s25, 0
      %p277 = por %p275, %p276
      %p278 = scmp.ne.s32.totalorder %s266, %s267
      %p279 = scmp.eq.s32.totalorder %s26, 2
      %p280 = por %p278, %p279
      %p282 = scmp.ne.s32.totalorder %s267, %s281
      %p283 = scmp.eq.s32.totalorder %s26, 0
      %p284 = por %p282, %p283
      %s285 = ssub.s32 %s20, %s27
      %p286 = scmp.eq.s32.totalorder %s285, 0
      %s288 = sadd.s32 %s287, 1
      %s289 = scalar_select %p286, %s287, %s288
      %p292 = pneg %p286
      %p293 = scmp.eq.s32.totalorder %s20, 2
      %p294 = por %p292, %p293
      %p295 = scmp.ne.s32.totalorder %s287, %s290
      %p296 = scmp.eq.s32.totalorder %s20, 0
      %p297 = por %p295, %p296
      %p298 = scmp.ne.s32.totalorder %s287, %s290
      %p299 = scmp.eq.s32.totalorder %s25, 2
      %p300 = por %p298, %p299
      %p301 = scmp.ne.s32.totalorder %s290, %s291
      %p302 = scmp.eq.s32.totalorder %s25, 0
      %p303 = por %p301, %p302
      %p304 = scmp.ne.s32.totalorder %s290, %s291
      %p305 = scmp.eq.s32.totalorder %s26, 2
      %p306 = por %p304, %p305
      %p308 = scmp.ne.s32.totalorder %s291, %s307
      %p309 = scmp.eq.s32.totalorder %s26, 0
      %p310 = por %p308, %p309
      %p311 = scmp.le.s32.totalorder 1, %s20
      %p312 = scmp.lt.s32.totalorder %s20, 4
      %p313 = pnand %p311, %p312
      %p314 = pneg %p313
      // Predicated region
      $region9: #{gnn_critic_forward.1} parent=5 // pred_check
        _
      $region10: #{gnn_critic_forward.1} parent=5 // pred_check_branch
        %316 = sbr.rel (%p313) target = $region12
      $region11: #{gnn_critic_forward.1} parent=5 // pred_region
        %s317 = ssub.s32 %s20, 1
        // Predicated region
        $region13: #{gnn_critic_forward.1} parent=11 // pred_check
          %p318 = pneg %p41
        $region14: #{gnn_critic_forward.1} parent=11 // pred_check_branch
          %320 = sbr.rel (%p318) target = $region16
        $region15: #{gnn_critic_forward.1} parent=11 // pred_region
          _
        $region16: #{gnn_critic_forward.1} parent=11 // pred_fallthru
          _
        // Predicated region
        $region17: #{gnn_critic_forward.1} parent=11 // pred_check
          %p321 = pneg %p88
        $region18: #{gnn_critic_forward.1} parent=11 // pred_check_branch
          %323 = sbr.rel (%p321) target = $region20
        $region19: #{gnn_critic_forward.1} parent=11 // pred_region
          _
        $region20: #{gnn_critic_forward.1} parent=11 // pred_fallthru
          _
        // Predicated region
        $region21: #{gnn_critic_forward.1} parent=11 // pred_check
          %p324 = pneg %p109
        $region22: #{gnn_critic_forward.1} parent=11 // pred_check_branch
          %326 = sbr.rel (%p324) target = $region24
        $region23: #{gnn_critic_forward.1} parent=11 // pred_region
          _
        $region24: #{gnn_critic_forward.1} parent=11 // pred_fallthru
          _
        // Predicated region
        $region25: #{gnn_critic_forward.1} parent=11 // pred_check
          %p327 = pneg %p130
        $region26: #{gnn_critic_forward.1} parent=11 // pred_check_branch
          %329 = sbr.rel (%p327) target = $region28
        $region27: #{gnn_critic_forward.1} parent=11 // pred_region
          _
        $region28: #{gnn_critic_forward.1} parent=11 // pred_fallthru
          _
        // Predicated region
        $region29: #{gnn_critic_forward.1} parent=11 // pred_check
          %p330 = pneg %p151
        $region30: #{gnn_critic_forward.1} parent=11 // pred_check_branch
          %332 = sbr.rel (%p330) target = $region32
        $region31: #{gnn_critic_forward.1} parent=11 // pred_region
          _
        $region32: #{gnn_critic_forward.1} parent=11 // pred_fallthru
          _
        // Predicated region
        $region33: #{gnn_critic_forward.1} parent=11 // pred_check
          %p333 = pneg %p172
        $region34: #{gnn_critic_forward.1} parent=11 // pred_check_branch
          %335 = sbr.rel (%p333) target = $region36
        $region35: #{gnn_critic_forward.1} parent=11 // pred_region
          _
        $region36: #{gnn_critic_forward.1} parent=11 // pred_fallthru
          _
        // Predicated region
        $region37: #{gnn_critic_forward.1} parent=11 // pred_check
          %p336 = pneg %p193
        $region38: #{gnn_critic_forward.1} parent=11 // pred_check_branch
          %338 = sbr.rel (%p336) target = $region40
        $region39: #{gnn_critic_forward.1} parent=11 // pred_region
          _
        $region40: #{gnn_critic_forward.1} parent=11 // pred_fallthru
          _
        // Predicated region
        $region41: #{gnn_critic_forward.1} parent=11 // pred_check
          %p339 = pneg %p214
        $region42: #{gnn_critic_forward.1} parent=11 // pred_check_branch
          %341 = sbr.rel (%p339) target = $region44
        $region43: #{gnn_critic_forward.1} parent=11 // pred_region
          _
        $region44: #{gnn_critic_forward.1} parent=11 // pred_fallthru
          _
        // Predicated region
        $region45: #{gnn_critic_forward.1} parent=11 // pred_check
          %p342 = pneg %p235
        $region46: #{gnn_critic_forward.1} parent=11 // pred_check_branch
          %344 = sbr.rel (%p342) target = $region48
        $region47: #{gnn_critic_forward.1} parent=11 // pred_region
          _
        $region48: #{gnn_critic_forward.1} parent=11 // pred_fallthru
          _
        // Predicated region
        $region49: #{gnn_critic_forward.1} parent=11 // pred_check
          %p345 = pneg %p256
        $region50: #{gnn_critic_forward.1} parent=11 // pred_check_branch
          %347 = sbr.rel (%p345) target = $region52
        $region51: #{gnn_critic_forward.1} parent=11 // pred_region
          _
        $region52: #{gnn_critic_forward.1} parent=11 // pred_fallthru
          _
        // Predicated region
        $region53: #{gnn_critic_forward.1} parent=11 // pred_check
          %p348 = pneg %p277
        $region54: #{gnn_critic_forward.1} parent=11 // pred_check_branch
          %350 = sbr.rel (%p348) target = $region56
        $region55: #{gnn_critic_forward.1} parent=11 // pred_region
          _
        $region56: #{gnn_critic_forward.1} parent=11 // pred_fallthru
          _
      $region12: #{gnn_critic_forward.1} parent=5 // pred_fallthru
        _
      %p351 = scmp.lt.s32.totalorder %s20, 3
      // Predicated region
      $region57: #{gnn_critic_forward.1} parent=5 // pred_check
        %p352 = pneg %p351
      $region58: #{gnn_critic_forward.1} parent=5 // pred_check_branch
        %354 = sbr.rel (%p352) target = $region60
      $region59: #{gnn_critic_forward.1} parent=5 // pred_region
        // Predicated region
        $region61: #{gnn_critic_forward.1} parent=59 // pred_check
          %p355 = pneg %p61
        $region62: #{gnn_critic_forward.1} parent=59 // pred_check_branch
          %357 = sbr.rel (%p355) target = $region64
        $region63: #{gnn_critic_forward.1} parent=59 // pred_region
          %s358 = sand.u32 %s51, 1
          %s359 = sand.u32 %s51, 1
          %s360 = smul.addr %s359, 64
          %s361 = scalar_lea.vmem [#allocation3], %s360
          %s362 = smul.u32 2, %s20
          %s363 = smul.addr %s362, 8
          %s364 = scalar_lea.vmem %s1, %s363
          // Predicated region
          $region65: #{gnn_critic_forward.1} parent=63 // pred_check
            _
          $region66: #{gnn_critic_forward.1} parent=63 // pred_check_branch
            %366 = sbr.rel (0) target = $region68
          $region67: #{gnn_critic_forward.1} parent=63 // pred_region
            // Predicated region
            $region69: #{gnn_critic_forward.1} parent=67 // pred_check
              _
            $region70: #{gnn_critic_forward.1} parent=67 // pred_check_branch
              %368 = sbr.rel (0) target = $region72
            $region71: #{gnn_critic_forward.1} parent=67 // pred_region
              // Predicated region
              $region84: #{gnn_critic_forward.1} parent=71 // pred_check
                _
              $region85: #{gnn_critic_forward.1} parent=71 // pred_check_branch
                %398 = sbr.rel (0) target = $region87
              $region86: #{gnn_critic_forward.1} parent=71 // pred_region
                loop: start=0, step=1, limit=1
                $region88: #{gnn_critic_forward.1} parent=86 // loop_pre_header
                  _
                $region89: #{gnn_critic_forward.1} parent=86 // loop_header
                  %s400 = sphi 0, %s404
                  %p401 = scmp.ge.s32.totalorder %s400, 1
                  %s405 = sphi %s364, %s364
                  %s406 = sphi %s361, %s361
                $region90: #{gnn_critic_forward.1} parent=86 // loop_header_branch
                  %403 = sbr.rel (%p401) target = $region94
                $region91: #{gnn_critic_forward.1} parent=86 // loop_body
                  %v407 = vld [vmem:[%s405] sm:$0xff]
                  %408 = vst [vmem:[%s406] sm:$0xff] %v407
                  %v409 = vld [vmem:[%s405 + $0x8] sm:$0xff]
                  %410 = vst [vmem:[%s406 + $0x8] sm:$0xff] %v409
                  %v411 = vld [vmem:[%s405 + $0x30] sm:$0xff]
                  %412 = vst [vmem:[%s406 + $0x10] sm:$0xff] %v411
                  %v413 = vld [vmem:[%s405 + $0x38] sm:$0xff]
                  %414 = vst [vmem:[%s406 + $0x18] sm:$0xff] %v413
                  %v415 = vld [vmem:[%s405 + $0x60] sm:$0xff]
                  %416 = vst [vmem:[%s406 + $0x20] sm:$0xff] %v415
                  %v417 = vld [vmem:[%s405 + $0x68] sm:$0xff]
                  %418 = vst [vmem:[%s406 + $0x28] sm:$0xff] %v417
                  %v419 = vld [vmem:[%s405 + $0x90] sm:$0xff]
                  %420 = vst [vmem:[%s406 + $0x30] sm:$0xff] %v419
                  %v421 = vld [vmem:[%s405 + $0x98] sm:$0xff]
                  %422 = vst [vmem:[%s406 + $0x38] sm:$0xff] %v421
                $region92: #{gnn_critic_forward.1} parent=86 // loop_footer
                  %s404 = sadd.s32 1, %s400
                $region93: #{gnn_critic_forward.1} parent=86 // loop_footer_branch
                  %399 = sbr.rel target = $region89
                $region94: #{gnn_critic_forward.1} parent=86 // loop_exit
                  _
              $region87: #{gnn_critic_forward.1} parent=71 // pred_fallthru
                _
              // Predicated region
              $region95: #{gnn_critic_forward.1} parent=71 // pred_check
                _
              $region96: #{gnn_critic_forward.1} parent=71 // pred_check_branch
                %424 = sbr.rel target = $region98
              $region97: #{gnn_critic_forward.1} parent=71 // pred_region
                _
              $region98: #{gnn_critic_forward.1} parent=71 // pred_fallthru
                _
            $region72: #{gnn_critic_forward.1} parent=67 // pred_fallthru
              _
            // Predicated region
            $region73: #{gnn_critic_forward.1} parent=67 // pred_check
              _
            $region74: #{gnn_critic_forward.1} parent=67 // pred_check_branch
              %370 = sbr.rel target = $region76
            $region75: #{gnn_critic_forward.1} parent=67 // pred_region
              %s372 = ssub.s32 256, 1
              loop: start=0, step=1, limit=1
              $region77: #{gnn_critic_forward.1} parent=75 // loop_pre_header
                _
              $region78: #{gnn_critic_forward.1} parent=75 // loop_header
                %s374 = sphi 0, %s378
                %p375 = scmp.ge.s32.totalorder %s374, 1
                %s379 = sphi %s364, %s364
                %s380 = sphi %s361, %s361
              $region79: #{gnn_critic_forward.1} parent=75 // loop_header_branch
                %377 = sbr.rel (%p375) target = $region83
              $region80: #{gnn_critic_forward.1} parent=75 // loop_body
                %v381 = vld [vmem:[%s379] sm:%s372]
                %382 = vst [vmem:[%s380] sm:%s372] %v381
                %v383 = vld [vmem:[%s379 + $0x8] sm:%s372]
                %384 = vst [vmem:[%s380 + $0x8] sm:%s372] %v383
                %v385 = vld [vmem:[%s379 + $0x30] sm:%s372]
                %386 = vst [vmem:[%s380 + $0x10] sm:%s372] %v385
                %v387 = vld [vmem:[%s379 + $0x38] sm:%s372]
                %388 = vst [vmem:[%s380 + $0x18] sm:%s372] %v387
                %v389 = vld [vmem:[%s379 + $0x60] sm:%s372]
                %390 = vst [vmem:[%s380 + $0x20] sm:%s372] %v389
                %v391 = vld [vmem:[%s379 + $0x68] sm:%s372]
                %392 = vst [vmem:[%s380 + $0x28] sm:%s372] %v391
                %v393 = vld [vmem:[%s379 + $0x90] sm:%s372]
                %394 = vst [vmem:[%s380 + $0x30] sm:%s372] %v393
                %v395 = vld [vmem:[%s379 + $0x98] sm:%s372]
                %396 = vst [vmem:[%s380 + $0x38] sm:%s372] %v395
              $region81: #{gnn_critic_forward.1} parent=75 // loop_footer
                %s378 = sadd.s32 1, %s374
              $region82: #{gnn_critic_forward.1} parent=75 // loop_footer_branch
                %373 = sbr.rel target = $region78
              $region83: #{gnn_critic_forward.1} parent=75 // loop_exit
                _
            $region76: #{gnn_critic_forward.1} parent=67 // pred_fallthru
              _
          $region68: #{gnn_critic_forward.1} parent=63 // pred_fallthru
            _
          %425 = vnop
        $region64: #{gnn_critic_forward.1} parent=59 // pred_fallthru
          _
      $region60: #{gnn_critic_forward.1} parent=5 // pred_fallthru
        _
      %p426 = scmp.le.s32.totalorder 1, %s20
      %p427 = scmp.lt.s32.totalorder %s20, 4
      %p428 = pnand %p426, %p427
      %p429 = pneg %p428
      // Predicated region
      $region99: #{gnn_critic_forward.1} parent=5 // pred_check
        _
      $region100: #{gnn_critic_forward.1} parent=5 // pred_check_branch
        %431 = sbr.rel (%p428) target = $region102
      $region101: #{gnn_critic_forward.1} parent=5 // pred_region
        %s432 = ssub.s32 %s20, 1
        %s433 = sand.u32 %s54, 1
        %s434 = sand.u32 %s54, 1
        %s435 = smul.addr %s434, 64
        %s436 = scalar_lea.vmem [#allocation3], %s435
        // Predicated region
        $region103: #{gnn_critic_forward.1} parent=101 // pred_check
          %p437 = pneg %p67
        $region104: #{gnn_critic_forward.1} parent=101 // pred_check_branch
          %439 = sbr.rel (%p437) target = $region106
        $region105: #{gnn_critic_forward.1} parent=101 // pred_region
          _
        $region106: #{gnn_critic_forward.1} parent=101 // pred_fallthru
          _
        %p440 = pneg %p41
        %p441 = pneg %p38
        %s442 = sand.u32 %s54, 1
        %s443 = sand.u32 %s54, 1
        %s444 = smul.addr %s443, 64
        %s445 = scalar_lea.vmem [#allocation3], %s444
        %p446 = pneg %p67
        %p447 = pneg %p64
        %p448 = pneg %p88
        %p449 = pneg %p85
        %p450 = pneg %p109
        %p451 = pneg %p106
        %p452 = pneg %p130
        %p453 = pneg %p127
        %p454 = pneg %p151
        %p455 = pneg %p148
        %p456 = pneg %p172
        %p457 = pneg %p169
        %p458 = pneg %p193
        %p459 = pneg %p190
        %p460 = pneg %p214
        %p461 = pneg %p211
        %p462 = pneg %p235
        %p463 = pneg %p232
        %p464 = pneg %p256
        %p465 = pneg %p253
        %p466 = pneg %p277
        %p467 = pneg %p274
        %p468 = pneg %p303
        %p469 = pneg %p300
        %p470 = scmp.lt.s32.totalorder %s25, 2
        %s471 = scalar_select %p470, %s25, 2
        %s472 = scalar_lea.vmem %s12, %s471
        %s473 = smul.u32 2, %s25
        %p474 = scmp.lt.s32.totalorder %s25, 2
        %s475 = scalar_select %p474, %s25, 2
        %s476 = scalar_lea.vmem %s12, %s475
        %v477 = vld [vmem:[%s0] sm:$0xff]
        %v478 = vld [vmem:[%s0 + $0x8] sm:$0xff]
        %v479 = vld [vmem:[%s0 + $0x10] sm:$0xff]
        %v480 = vld [vmem:[%s0 + $0x18] sm:$0xff]
        %v481 = vld [vmem:[%s0 + $0x20] sm:$0xff]
        %v482 = vld [vmem:[%s0 + $0x28] sm:$0xff]
        %v483 = vld [vmem:[%s0 + $0x30] sm:$0xff]
        %v484 = vld [vmem:[%s0 + $0x38] sm:$0xff]
        %v485 = vld [vmem:[%s436] sm:$0xff]
        %v486 = vld [vmem:[%s436 + $0x8] sm:$0xff]
        %v487 = vld [vmem:[%s436 + $0x10] sm:$0xff]
        %v488 = vld [vmem:[%s436 + $0x18] sm:$0xff]
        %v489 = vld [vmem:[%s436 + $0x20] sm:$0xff]
        %v490 = vld [vmem:[%s436 + $0x28] sm:$0xff]
        %v491 = vld [vmem:[%s436 + $0x30] sm:$0xff]
        %v492 = vld [vmem:[%s436 + $0x38] sm:$0xff]
        %v493 = vld [vmem:[%s2] sm:$0xff]
        %vm494 = vcmask 64512
        %v496 = vsel %vm494, %v485, 0
        %v499 = vsel %vm494, %v486, 0
        %v502 = vsel %vm494, %v487, 0
        %v505 = vsel %vm494, %v488, 0
        %v508 = vsel %vm494, %v489, 0
        %v511 = vsel %vm494, %v490, 0
        %v514 = vsel %vm494, %v491, 0
        %v517 = vsel %vm494, %v492, 0
        %519 = vmatpush.msra.mxu0 0.0
        %520 = vmatpush.msra.mxu0 0.0
        %521 = vmatpush.msra.mxu0 0.0
        %522 = vmatpush.msra.mxu0 0.0
        %523 = vmatpush.msra.mxu0 0.0
        %524 = vmatpush.msra.mxu0 0.0
        %525 = vmatpush.msra.mxu0 0.0
        %526 = vmatpush.msra.mxu0 0.0
        %527 = vmatpush.msra.mxu0 0.0
        %528 = vmatpush.msra.mxu0 0.0
        %529 = vmatpush.msra.mxu0 0.0
        %530 = vmatpush.msra.mxu0 0.0
        %531 = vmatpush.msra.mxu0 0.0
        %532 = vmatpush.msra.mxu0 0.0
        %533 = vmatpush.msra.mxu0 0.0
        %534 = vmatpush.msra.mxu0 %v493
        %535 = vmatmul.f32.gmra.mxu0 %v496
        %v536 = vpop.f32.mrf.mxu0
        %v537 = vadd.f32 0.0, %v536
        %538 = vmatmul.f32.gmra.mxu0 %v499
        %v539 = vpop.f32.mrf.mxu0
        %v540 = vadd.f32 0.0, %v539
        %541 = vmatmul.f32.gmra.mxu0 %v502
        %v542 = vpop.f32.mrf.mxu0
        %v543 = vadd.f32 0.0, %v542
        %544 = vmatmul.f32.gmra.mxu0 %v505
        %v545 = vpop.f32.mrf.mxu0
        %v546 = vadd.f32 0.0, %v545
        %547 = vmatmul.f32.gmra.mxu0 %v508
        %v548 = vpop.f32.mrf.mxu0
        %v549 = vadd.f32 0.0, %v548
        %550 = vmatmul.f32.gmra.mxu0 %v511
        %v551 = vpop.f32.mrf.mxu0
        %v552 = vadd.f32 0.0, %v551
        %553 = vmatmul.f32.gmra.mxu0 %v514
        %v554 = vpop.f32.mrf.mxu0
        %v555 = vadd.f32 0.0, %v554
        %556 = vmatmul.f32.gmra.mxu0 %v517
        %v557 = vpop.f32.mrf.mxu0
        %v558 = vadd.f32 0.0, %v557
        %559 = vdwg.mxu0
        %568 = vrot.lane.b32.xlu0 %v537, 112
        %v569 = vpop.permute.xlu0 %568
        %570 = vrot.lane.b32.xlu0 %v540, 112
        %v571 = vpop.permute.xlu0 %570
        %572 = vrot.lane.b32.xlu0 %v543, 112
        %v573 = vpop.permute.xlu0 %572
        %574 = vrot.lane.b32.xlu0 %v546, 112
        %v575 = vpop.permute.xlu0 %574
        %576 = vrot.lane.b32.xlu0 %v549, 112
        %v577 = vpop.permute.xlu0 %576
        %578 = vrot.lane.b32.xlu0 %v552, 112
        %v579 = vpop.permute.xlu0 %578
        %580 = vrot.lane.b32.xlu0 %v555, 112
        %v581 = vpop.permute.xlu0 %580
        %582 = vrot.lane.b32.xlu0 %v558, 112
        %v583 = vpop.permute.xlu0 %582
        %vm592 = vcmask 523264
        %v594 = vsel %vm592, %v477, 0
        %v597 = vsel %vm592, %v478, 0
        %v600 = vsel %vm592, %v479, 0
        %v603 = vsel %vm592, %v480, 0
        %v606 = vsel %vm592, %v481, 0
        %v609 = vsel %vm592, %v482, 0
        %v612 = vsel %vm592, %v483, 0
        %v615 = vsel %vm592, %v484, 0
        %617 = vmatpush.msra.mxu0 0.0
        %618 = vmatpush.msra.mxu0 0.0
        %619 = vmatpush.msra.mxu0 0.0
        %620 = vmatpush.msra.mxu0 0.0
        %621 = vmatpush.msra.mxu0 0.0
        %622 = vmatpush.msra.mxu0 0.0
        %623 = vmatpush.msra.mxu0 0.0
        %624 = vmatpush.msra.mxu0 0.0
        %625 = vmatpush.msra.mxu0 %v583
        %626 = vmatpush.msra.mxu0 %v581
        %627 = vmatpush.msra.mxu0 %v579
        %628 = vmatpush.msra.mxu0 %v577
        %629 = vmatpush.msra.mxu0 %v575
        %630 = vmatpush.msra.mxu0 %v573
        %631 = vmatpush.msra.mxu0 %v571
        %632 = vmatpush.msra.mxu0 %v569
        %633 = vmatmul.f32.gmra.mxu0 %v594
        %v634 = vpop.f32.mrf.mxu0
        %v635 = vadd.f32 0.0, %v634
        %636 = vmatmul.f32.gmra.mxu0 %v597
        %v637 = vpop.f32.mrf.mxu0
        %v638 = vadd.f32 0.0, %v637
        %639 = vmatmul.f32.gmra.mxu0 %v600
        %v640 = vpop.f32.mrf.mxu0
        %v641 = vadd.f32 0.0, %v640
        %642 = vmatmul.f32.gmra.mxu0 %v603
        %v643 = vpop.f32.mrf.mxu0
        %v644 = vadd.f32 0.0, %v643
        %645 = vmatmul.f32.gmra.mxu0 %v606
        %v646 = vpop.f32.mrf.mxu0
        %v647 = vadd.f32 0.0, %v646
        %648 = vmatmul.f32.gmra.mxu0 %v609
        %v649 = vpop.f32.mrf.mxu0
        %v650 = vadd.f32 0.0, %v649
        %651 = vmatmul.f32.gmra.mxu0 %v612
        %v652 = vpop.f32.mrf.mxu0
        %v653 = vadd.f32 0.0, %v652
        %654 = vmatmul.f32.gmra.mxu0 %v615
        %v655 = vpop.f32.mrf.mxu0
        %v656 = vadd.f32 0.0, %v655
        %657 = vdwg.mxu0
        %666 = vrot.lane.b32.xlu0 %v635, 16
        %v667 = vpop.permute.xlu0 %666
        %668 = vrot.lane.b32.xlu0 %v638, 16
        %v669 = vpop.permute.xlu0 %668
        %670 = vrot.lane.b32.xlu0 %v641, 16
        %v671 = vpop.permute.xlu0 %670
        %672 = vrot.lane.b32.xlu0 %v644, 16
        %v673 = vpop.permute.xlu0 %672
        %674 = vrot.lane.b32.xlu0 %v647, 16
        %v675 = vpop.permute.xlu0 %674
        %676 = vrot.lane.b32.xlu0 %v650, 16
        %v677 = vpop.permute.xlu0 %676
        %678 = vrot.lane.b32.xlu0 %v653, 16
        %v679 = vpop.permute.xlu0 %678
        %680 = vrot.lane.b32.xlu0 %v656, 16
        %v681 = vpop.permute.xlu0 %680
        %vm690 = vcmask 130048
        %v691 = vsel %vm690, %v537, %v667
        %v692 = vsel %vm690, %v540, %v669
        %v693 = vsel %vm690, %v543, %v671
        %v694 = vsel %vm690, %v546, %v673
        %v695 = vsel %vm690, %v549, %v675
        %v696 = vsel %vm690, %v552, %v677
        %v697 = vsel %vm690, %v555, %v679
        %v698 = vsel %vm690, %v558, %v681
        %v699 = vld [vmem:[%s3] sm:$0x1]
        %v701 = vperm.slane %v699, 0
        %v703 = vadd.f32 %v691, %v701
        %v704 = vadd.f32 %v692, %v701
        %v705 = vadd.f32 %v693, %v701
        %v706 = vadd.f32 %v694, %v701
        %v707 = vadd.f32 %v695, %v701
        %v708 = vadd.f32 %v696, %v701
        %v709 = vadd.f32 %v697, %v701
        %v710 = vadd.f32 %v698, %v701
        %v711 = vmax.f32 %v703, 0.0
        %v712 = vmax.f32 %v704, 0.0
        %v713 = vmax.f32 %v705, 0.0
        %v714 = vmax.f32 %v706, 0.0
        %v715 = vmax.f32 %v707, 0.0
        %v716 = vmax.f32 %v708, 0.0
        %v717 = vmax.f32 %v709, 0.0
        %v718 = vmax.f32 %v710, 0.0
        %v719 = vld [vmem:[%s4] sm:$0xff]
        %v720 = vld [vmem:[%s4 + $0x8] sm:$0xff]
        %v721 = vld [vmem:[%s4 + $0x10] sm:$0xff]
        %v722 = vld [vmem:[%s4 + $0x18] sm:$0xff]
        %vm723 = vcmask 261120
        %v725 = vsel %vm723, %v711, 0
        %v728 = vsel %vm723, %v712, 0
        %v731 = vsel %vm723, %v713, 0
        %v734 = vsel %vm723, %v714, 0
        %v737 = vsel %vm723, %v715, 0
        %v740 = vsel %vm723, %v716, 0
        %v743 = vsel %vm723, %v717, 0
        %v746 = vsel %vm723, %v718, 0
        %748 = vmatpush.msra.mxu0 0.0
        %749 = vmatpush.msra.mxu0 0.0
        %750 = vmatpush.msra.mxu0 0.0
        %751 = vmatpush.msra.mxu0 0.0
        %752 = vmatpush.msra.mxu0 0.0
        %753 = vmatpush.msra.mxu0 0.0
        %754 = vmatpush.msra.mxu0 0.0
        %755 = vmatpush.msra.mxu0 0.0
        %756 = vmatpush.msra.mxu0 0.0
        %757 = vmatpush.msra.mxu0 0.0
        %758 = vmatpush.msra.mxu0 0.0
        %759 = vmatpush.msra.mxu0 0.0
        %760 = vmatpush.msra.mxu0 %v722
        %761 = vmatpush.msra.mxu0 %v721
        %762 = vmatpush.msra.mxu0 %v720
        %763 = vmatpush.msra.mxu0 %v719
        %764 = vmatmul.f32.gmra.mxu0 %v725
        %v765 = vpop.f32.mrf.mxu0
        %v766 = vadd.f32 0.0, %v765
        %767 = vmatmul.f32.gmra.mxu0 %v728
        %v768 = vpop.f32.mrf.mxu0
        %v769 = vadd.f32 0.0, %v768
        %770 = vmatmul.f32.gmra.mxu0 %v731
        %v771 = vpop.f32.mrf.mxu0
        %v772 = vadd.f32 0.0, %v771
        %773 = vmatmul.f32.gmra.mxu0 %v734
        %v774 = vpop.f32.mrf.mxu0
        %v775 = vadd.f32 0.0, %v774
        %776 = vmatmul.f32.gmra.mxu0 %v737
        %v777 = vpop.f32.mrf.mxu0
        %v778 = vadd.f32 0.0, %v777
        %779 = vmatmul.f32.gmra.mxu0 %v740
        %v780 = vpop.f32.mrf.mxu0
        %v781 = vadd.f32 0.0, %v780
        %782 = vmatmul.f32.gmra.mxu0 %v743
        %v783 = vpop.f32.mrf.mxu0
        %v784 = vadd.f32 0.0, %v783
        %785 = vmatmul.f32.gmra.mxu0 %v746
        %v786 = vpop.f32.mrf.mxu0
        %v787 = vadd.f32 0.0, %v786
        %788 = vdwg.mxu0
        %797 = vrot.lane.b32.xlu0 %v766, 112
        %v798 = vpop.permute.xlu0 %797
        %799 = vrot.lane.b32.xlu0 %v769, 112
        %v800 = vpop.permute.xlu0 %799
        %801 = vrot.lane.b32.xlu0 %v772, 112
        %v802 = vpop.permute.xlu0 %801
        %803 = vrot.lane.b32.xlu0 %v775, 112
        %v804 = vpop.permute.xlu0 %803
        %805 = vrot.lane.b32.xlu0 %v778, 112
        %v806 = vpop.permute.xlu0 %805
        %807 = vrot.lane.b32.xlu0 %v781, 112
        %v808 = vpop.permute.xlu0 %807
        %809 = vrot.lane.b32.xlu0 %v784, 112
        %v810 = vpop.permute.xlu0 %809
        %811 = vrot.lane.b32.xlu0 %v787, 112
        %v812 = vpop.permute.xlu0 %811
        %821 = vmatpush.msra.mxu0 0.0
        %822 = vmatpush.msra.mxu0 0.0
        %823 = vmatpush.msra.mxu0 0.0
        %824 = vmatpush.msra.mxu0 0.0
        %825 = vmatpush.msra.mxu0 0.0
        %826 = vmatpush.msra.mxu0 0.0
        %827 = vmatpush.msra.mxu0 0.0
        %828 = vmatpush.msra.mxu0 0.0
        %829 = vmatpush.msra.mxu0 %v812
        %830 = vmatpush.msra.mxu0 %v810
        %831 = vmatpush.msra.mxu0 %v808
        %832 = vmatpush.msra.mxu0 %v806
        %833 = vmatpush.msra.mxu0 %v804
        %834 = vmatpush.msra.mxu0 %v802
        %835 = vmatpush.msra.mxu0 %v800
        %836 = vmatpush.msra.mxu0 %v798
        %837 = vmatmul.f32.gmra.mxu0 %v594
        %v838 = vpop.f32.mrf.mxu0
        %v839 = vadd.f32 0.0, %v838
        %840 = vmatmul.f32.gmra.mxu0 %v597
        %v841 = vpop.f32.mrf.mxu0
        %v842 = vadd.f32 0.0, %v841
        %843 = vmatmul.f32.gmra.mxu0 %v600
        %v844 = vpop.f32.mrf.mxu0
        %v845 = vadd.f32 0.0, %v844
        %846 = vmatmul.f32.gmra.mxu0 %v603
        %v847 = vpop.f32.mrf.mxu0
        %v848 = vadd.f32 0.0, %v847
        %849 = vmatmul.f32.gmra.mxu0 %v606
        %v850 = vpop.f32.mrf.mxu0
        %v851 = vadd.f32 0.0, %v850
        %852 = vmatmul.f32.gmra.mxu0 %v609
        %v853 = vpop.f32.mrf.mxu0
        %v854 = vadd.f32 0.0, %v853
        %855 = vmatmul.f32.gmra.mxu0 %v612
        %v856 = vpop.f32.mrf.mxu0
        %v857 = vadd.f32 0.0, %v856
        %858 = vmatmul.f32.gmra.mxu0 %v615
        %v859 = vpop.f32.mrf.mxu0
        %v860 = vadd.f32 0.0, %v859
        %861 = vdwg.mxu0
        %870 = vrot.lane.b32.xlu0 %v839, 16
        %v871 = vpop.permute.xlu0 %870
        %872 = vrot.lane.b32.xlu0 %v842, 16
        %v873 = vpop.permute.xlu0 %872
        %874 = vrot.lane.b32.xlu0 %v845, 16
        %v875 = vpop.permute.xlu0 %874
        %876 = vrot.lane.b32.xlu0 %v848, 16
        %v877 = vpop.permute.xlu0 %876
        %878 = vrot.lane.b32.xlu0 %v851, 16
        %v879 = vpop.permute.xlu0 %878
        %880 = vrot.lane.b32.xlu0 %v854, 16
        %v881 = vpop.permute.xlu0 %880
        %882 = vrot.lane.b32.xlu0 %v857, 16
        %v883 = vpop.permute.xlu0 %882
        %884 = vrot.lane.b32.xlu0 %v860, 16
        %v885 = vpop.permute.xlu0 %884
        %v894 = vsel %vm690, %v766, %v871
        %v895 = vsel %vm690, %v769, %v873
        %v896 = vsel %vm690, %v772, %v875
        %v897 = vsel %vm690, %v775, %v877
        %v898 = vsel %vm690, %v778, %v879
        %v899 = vsel %vm690, %v781, %v881
        %v900 = vsel %vm690, %v784, %v883
        %v901 = vsel %vm690, %v787, %v885
        %v902 = vld [vmem:[%s5] sm:$0x1]
        %v904 = vperm.slane %v902, 0
        %v906 = vadd.f32 %v894, %v904
        %v907 = vadd.f32 %v895, %v904
        %v908 = vadd.f32 %v896, %v904
        %v909 = vadd.f32 %v897, %v904
        %v910 = vadd.f32 %v898, %v904
        %v911 = vadd.f32 %v899, %v904
        %v912 = vadd.f32 %v900, %v904
        %v913 = vadd.f32 %v901, %v904
        %v914 = vmax.f32 %v906, 0.0
        %v915 = vmax.f32 %v907, 0.0
        %v916 = vmax.f32 %v908, 0.0
        %v917 = vmax.f32 %v909, 0.0
        %v918 = vmax.f32 %v910, 0.0
        %v919 = vmax.f32 %v911, 0.0
        %v920 = vmax.f32 %v912, 0.0
        %v921 = vmax.f32 %v913, 0.0
        %v922 = vld [vmem:[%s6] sm:$0xff]
        %v923 = vld [vmem:[%s6 + $0x8] sm:$0xff]
        %v924 = vld [vmem:[%s6 + $0x10] sm:$0xff]
        %v925 = vld [vmem:[%s6 + $0x18] sm:$0xff]
        %s926 = scalar_lea.vmem %s6, 32
        %v927 = vld [vmem:[%s926] sm:$0xff]
        %v928 = vld [vmem:[%s926 + $0x8] sm:$0xff]
        %v929 = vld [vmem:[%s926 + $0x10] sm:$0xff]
        %v930 = vld [vmem:[%s926 + $0x18] sm:$0xff]
        %v932 = vsel %vm723, %v916, 0
        %v935 = vsel %vm723, %v917, 0
        %937 = vmatpush.msra.mxu0 0.0
        %938 = vmatpush.msra.mxu0 0.0
        %939 = vmatpush.msra.mxu0 0.0
        %940 = vmatpush.msra.mxu0 0.0
        %941 = vmatpush.msra.mxu0 0.0
        %942 = vmatpush.msra.mxu0 0.0
        %943 = vmatpush.msra.mxu0 0.0
        %944 = vmatpush.msra.mxu0 0.0
        %945 = vmatpush.msra.mxu0 0.0
        %946 = vmatpush.msra.mxu0 0.0
        %947 = vmatpush.msra.mxu0 0.0
        %948 = vmatpush.msra.mxu0 0.0
        %949 = vmatpush.msra.mxu0 %v930
        %950 = vmatpush.msra.mxu0 %v929
        %951 = vmatpush.msra.mxu0 %v928
        %952 = vmatpush.msra.mxu0 %v927
        %953 = vmatmul.f32.gmra.mxu0 %v932
        %v954 = vpop.f32.mrf.mxu0
        %v955 = vadd.f32 0.0, %v954
        %956 = vmatmul.f32.gmra.mxu0 %v935
        %v957 = vpop.f32.mrf.mxu0
        %v958 = vadd.f32 0.0, %v957
        %959 = vdwg.mxu0
        %v961 = vsel %vm723, %v914, 0
        %v964 = vsel %vm723, %v915, 0
        %966 = vmatpush.msra.mxu0 0.0
        %967 = vmatpush.msra.mxu0 0.0
        %968 = vmatpush.msra.mxu0 0.0
        %969 = vmatpush.msra.mxu0 0.0
        %970 = vmatpush.msra.mxu0 0.0
        %971 = vmatpush.msra.mxu0 0.0
        %972 = vmatpush.msra.mxu0 0.0
        %973 = vmatpush.msra.mxu0 0.0
        %974 = vmatpush.msra.mxu0 0.0
        %975 = vmatpush.msra.mxu0 0.0
        %976 = vmatpush.msra.mxu0 0.0
        %977 = vmatpush.msra.mxu0 0.0
        %978 = vmatpush.msra.mxu0 %v925
        %979 = vmatpush.msra.mxu0 %v924
        %980 = vmatpush.msra.mxu0 %v923
        %981 = vmatpush.msra.mxu0 %v922
        %982 = vmatmul.f32.gmra.mxu0 %v961
        %v983 = vpop.f32.mrf.mxu0
        %v984 = vadd.f32 %v955, %v983
        %985 = vmatmul.f32.gmra.mxu0 %v964
        %v986 = vpop.f32.mrf.mxu0
        %v987 = vadd.f32 %v958, %v986
        %988 = vdwg.mxu0
        %s989 = scalar_lea.vmem %s6, 64
        %v990 = vld [vmem:[%s989] sm:$0xff]
        %v991 = vld [vmem:[%s989 + $0x8] sm:$0xff]
        %v992 = vld [vmem:[%s989 + $0x10] sm:$0xff]
        %v993 = vld [vmem:[%s989 + $0x18] sm:$0xff]
        %v995 = vsel %vm723, %v918, 0
        %v998 = vsel %vm723, %v919, 0
        %1000 = vmatpush.msra.mxu0 0.0
        %1001 = vmatpush.msra.mxu0 0.0
        %1002 = vmatpush.msra.mxu0 0.0
        %1003 = vmatpush.msra.mxu0 0.0
        %1004 = vmatpush.msra.mxu0 0.0
        %1005 = vmatpush.msra.mxu0 0.0
        %1006 = vmatpush.msra.mxu0 0.0
        %1007 = vmatpush.msra.mxu0 0.0
        %1008 = vmatpush.msra.mxu0 0.0
        %1009 = vmatpush.msra.mxu0 0.0
        %1010 = vmatpush.msra.mxu0 0.0
        %1011 = vmatpush.msra.mxu0 0.0
        %1012 = vmatpush.msra.mxu0 %v993
        %1013 = vmatpush.msra.mxu0 %v992
        %1014 = vmatpush.msra.mxu0 %v991
        %1015 = vmatpush.msra.mxu0 %v990
        %1016 = vmatmul.f32.gmra.mxu0 %v995
        %v1017 = vpop.f32.mrf.mxu0
        %v1018 = vadd.f32 0.0, %v1017
        %1019 = vmatmul.f32.gmra.mxu0 %v998
        %v1020 = vpop.f32.mrf.mxu0
        %v1021 = vadd.f32 0.0, %v1020
        %1022 = vdwg.mxu0
        %v1023 = vadd.f32 %v984, %v1018
        %v1024 = vadd.f32 %v987, %v1021
        %s1025 = scalar_lea.vmem %s6, 96
        %v1026 = vld [vmem:[%s1025] sm:$0xff]
        %v1027 = vld [vmem:[%s1025 + $0x8] sm:$0xff]
        %v1028 = vld [vmem:[%s1025 + $0x10] sm:$0xff]
        %v1029 = vld [vmem:[%s1025 + $0x18] sm:$0xff]
        %v1031 = vsel %vm723, %v920, 0
        %v1034 = vsel %vm723, %v921, 0
        %1036 = vmatpush.msra.mxu0 0.0
        %1037 = vmatpush.msra.mxu0 0.0
        %1038 = vmatpush.msra.mxu0 0.0
        %1039 = vmatpush.msra.mxu0 0.0
        %1040 = vmatpush.msra.mxu0 0.0
        %1041 = vmatpush.msra.mxu0 0.0
        %1042 = vmatpush.msra.mxu0 0.0
        %1043 = vmatpush.msra.mxu0 0.0
        %1044 = vmatpush.msra.mxu0 0.0
        %1045 = vmatpush.msra.mxu0 0.0
        %1046 = vmatpush.msra.mxu0 0.0
        %1047 = vmatpush.msra.mxu0 0.0
        %1048 = vmatpush.msra.mxu0 %v1029
        %1049 = vmatpush.msra.mxu0 %v1028
        %1050 = vmatpush.msra.mxu0 %v1027
        %1051 = vmatpush.msra.mxu0 %v1026
        %1052 = vmatmul.f32.gmra.mxu0 %v1031
        %v1053 = vpop.f32.mrf.mxu0
        %v1054 = vadd.f32 0.0, %v1053
        %1055 = vmatmul.f32.gmra.mxu0 %v1034
        %v1056 = vpop.f32.mrf.mxu0
        %v1057 = vadd.f32 0.0, %v1056
        %1058 = vdwg.mxu0
        %v1059 = vadd.f32 %v1023, %v1054
        %v1060 = vadd.f32 %v1024, %v1057
        %v1061 = vld [vmem:[%s7] sm:$0x1]
        %v1063 = vperm.slane %v1061, 0
        %v1065 = vadd.f32 %v1059, %v1063
        %v1066 = vadd.f32 %v1060, %v1063
        %v1067 = vtanh.pop %v1065
        %v1068 = vtanh.pop %v1066
        %v1069 = vld [vmem:[%s8] sm:$0xff]
        %v1070 = vld [vmem:[%s8 + $0x8] sm:$0xff]
        %v1071 = vld [vmem:[%s8 + $0x10] sm:$0xff]
        %v1072 = vld [vmem:[%s8 + $0x18] sm:$0xff]
        %v1073 = vld [vmem:[%s9] sm:$0x1]
        %v1075 = vperm.slane %v1073, 0
        %v1078 = vsel %vm723, %v1067, 0
        %v1081 = vsel %vm723, %v1068, 0
        %1083 = vmatpush.msra.mxu0 0.0
        %1084 = vmatpush.msra.mxu0 0.0
        %1085 = vmatpush.msra.mxu0 0.0
        %1086 = vmatpush.msra.mxu0 0.0
        %1087 = vmatpush.msra.mxu0 0.0
        %1088 = vmatpush.msra.mxu0 0.0
        %1089 = vmatpush.msra.mxu0 0.0
        %1090 = vmatpush.msra.mxu0 0.0
        %1091 = vmatpush.msra.mxu0 0.0
        %1092 = vmatpush.msra.mxu0 0.0
        %1093 = vmatpush.msra.mxu0 0.0
        %1094 = vmatpush.msra.mxu0 0.0
        %1095 = vmatpush.msra.mxu0 %v1072
        %1096 = vmatpush.msra.mxu0 %v1071
        %1097 = vmatpush.msra.mxu0 %v1070
        %1098 = vmatpush.msra.mxu0 %v1069
        %1099 = vmatmul.f32.gmra.mxu0 %v1078
        %v1100 = vpop.f32.mrf.mxu0
        %v1101 = vadd.f32 %v1075, %v1100
        %1102 = vmatmul.f32.gmra.mxu0 %v1081
        %v1103 = vpop.f32.mrf.mxu0
        %v1104 = vadd.f32 %v1075, %v1103
        %1105 = vdwg.mxu0
        %v1106 = vtanh.pop %v1101
        %v1107 = vtanh.pop %v1104
        %v1108 = vld [vmem:[%s10] sm:$0x1]
        %v1109 = vld [vmem:[#allocation2] sm:$0x1]
        %1111 = vset.pattern.permute.xlu0 0
        %1112 = vperm.xlu0 %1111, %v1109
        %v1113 = vpop.permute.xlu0 %1112
        %v1115 = vperm.slane %v1113, 0
        %v1117 = vsel %vm723, %v1108, 0
        %v1120 = vsel %vm723, %v1106, 0
        %v1123 = vsel %vm723, %v1107, 0
        %1125 = vmatpush.xpose.msra.mxu0 0.0
        %1126 = vmatpush.xpose.msra.mxu0 0.0
        %1127 = vmatpush.xpose.msra.mxu0 0.0
        %1128 = vmatpush.xpose.msra.mxu0 0.0
        %1129 = vmatpush.xpose.msra.mxu0 0.0
        %1130 = vmatpush.xpose.msra.mxu0 0.0
        %1131 = vmatpush.xpose.msra.mxu0 0.0
        %1132 = vmatpush.xpose.msra.mxu0 0.0
        %1133 = vmatpush.xpose.msra.mxu0 0.0
        %1134 = vmatpush.xpose.msra.mxu0 0.0
        %1135 = vmatpush.xpose.msra.mxu0 0.0
        %1136 = vmatpush.xpose.msra.mxu0 0.0
        %1137 = vmatpush.xpose.msra.mxu0 0.0
        %1138 = vmatpush.xpose.msra.mxu0 0.0
        %1139 = vmatpush.xpose.msra.mxu0 %v1123
        %1140 = vmatpush.xpose.msra.mxu0 %v1120
        %1141 = vmatmul.f32.gmra.mxu0 %v1117
        %v1142 = vpop.f32.mrf.mxu0
        %v1143 = vadd.f32 %v1115, %v1142
        %1144 = vdwg.mxu0
        %vm1145 = vcmask 122880
        %1146 = vst.msk [vmem:[%s476] sm:$0x1] %vm1145, %v1143
        %p1147 = scmp.lt.s32.totalorder %s25, 2
        %s1148 = scalar_select %p1147, %s25, 2
        %s1149 = scalar_lea.vmem %s12, %s1148
        // Predicated region
        $region107: #{gnn_critic_forward.1} parent=101 // pred_check
          %p1150 = pneg %p300
        $region108: #{gnn_critic_forward.1} parent=101 // pred_check_branch
          %1152 = sbr.rel (%p1150) target = $region110
        $region109: #{gnn_critic_forward.1} parent=101 // pred_region
          _
        $region110: #{gnn_critic_forward.1} parent=101 // pred_fallthru
          _
      $region102: #{gnn_critic_forward.1} parent=5 // pred_fallthru
        _
      %p1153 = scmp.le.s32.totalorder 2, %s20
      // Predicated region
      $region111: #{gnn_critic_forward.1} parent=5 // pred_check
        %p1154 = pneg %p1153
      $region112: #{gnn_critic_forward.1} parent=5 // pred_check_branch
        %1156 = sbr.rel (%p1154) target = $region114
      $region113: #{gnn_critic_forward.1} parent=5 // pred_region
        %s1157 = ssub.s32 %s20, 2
        // Predicated region
        $region115: #{gnn_critic_forward.1} parent=113 // pred_check
          %p1158 = pneg %p306
        $region116: #{gnn_critic_forward.1} parent=113 // pred_check_branch
          %1160 = sbr.rel (%p1158) target = $region118
        $region117: #{gnn_critic_forward.1} parent=113 // pred_region
          %p1161 = scmp.lt.s32.totalorder %s26, 2
          %s1162 = scalar_select %p1161, %s26, 2
          %s1163 = scalar_lea.vmem %s12, %s1162
        $region118: #{gnn_critic_forward.1} parent=113 // pred_fallthru
          _
      $region114: #{gnn_critic_forward.1} parent=5 // pred_fallthru
        _
    $region6: #{gnn_critic_forward.1} parent=1 // loop_footer
      %s24 = sadd.s32 1, %s20
    $region7: #{gnn_critic_forward.1} parent=1 // loop_footer_branch
      %19 = sbr.rel target = $region3
    $region8: #{gnn_critic_forward.1} parent=1 // loop_exit
      _

</llo_original>
